<compile_context>
chip_gen: v7x
topology: tpu7x:2x2x1
jax: 0.10.0
libtpu: 0.0.40
codegen_flags: <defaults>
</compile_context>

<pallas_src>
import functools

import jax
import jax.numpy as jnp
from jax.experimental import pallas as pl
from jax.experimental.pallas import tpu as pltpu


# ----------------------------------------------------------------------------
# helpers
# ----------------------------------------------------------------------------
def _round_up(x, m):
    return ((x + m - 1) // m) * m


def _pick_tile(dim, align, candidates):
    """Largest candidate tile that divides round_up(dim, align)."""
    d = _round_up(dim, align)
    for c in candidates:
        if d % c == 0:
            return c
    return align


def _pad2(a, rows, cols, dtype=None):
    if dtype is not None:
        a = a.astype(dtype)
    return jnp.pad(a, ((0, rows - a.shape[0]), (0, cols - a.shape[1])))


def _pad_bias(b, n):
    return jnp.pad(b.astype(jnp.float32), (0, n - b.shape[0])).reshape(1, n)


# ----------------------------------------------------------------------------
# Kernel 1: tiled linear  y = act(x @ w + b)
#   grid = (M/tm, N/tn, K/tk), f32 VMEM accumulator, bf16 MXU operands.
#   Optionally fuses the (issue + share) / 2 template-embedding average into
#   the input tile (n_x == 2), avoiding a separate memory-bound pass.
# ----------------------------------------------------------------------------
def _tiled_linear_kernel(*refs, activation, n_x):
    x_refs = refs[:n_x]
    w_ref, b_ref, o_ref, acc_ref = refs[n_x:n_x + 4]

    k = pl.program_id(2)

    @pl.when(k == 0)
    def _():
        acc_ref[...] = jnp.zeros_like(acc_ref)

    if n_x == 1:
        x = x_refs[0][...]
    else:
        # fused (issue + share) / 2  — VPU work hidden under the MXU
        x = ((x_refs[0][...].astype(jnp.float32)
              + x_refs[1][...].astype(jnp.float32)) * 0.5).astype(jnp.bfloat16)

    acc_ref[...] += jnp.dot(x, w_ref[...], preferred_element_type=jnp.float32)

    @pl.when(k == pl.num_programs(2) - 1)
    def _():
        y = acc_ref[...] + b_ref[...]          # (tm, tn) + (1, tn)
        if activation == "tanh":
            y = jnp.tanh(y)
        o_ref[...] = y.astype(o_ref.dtype)


def tiled_linear(x, w, b, *, activation=None, x2=None,
                 out_dtype=jnp.float32, return_padded=False):
    M, K = x.shape
    Kw, N = w.shape
    assert Kw <= K
    if x2 is not None:
        assert x2.shape == x.shape

    # Tile sizes: big tiles for pipelining, sized so 2x-buffered tiles fit
    # comfortably inside v7x's 64 MiB VMEM (and v5e/v6e 128 MiB).
    tm = _pick_tile(M, 8, (512, 256, 128, 64, 32, 16, 8))
    tk = _pick_tile(K, 128, (1024, 768, 512, 384, 256, 128))
    tn = _pick_tile(N, 128, (512, 384, 256, 128))
    Mp, Kp, Np = _round_up(M, 8), _round_up(K, 128), _round_up(N, 128)

    xs = [_pad2(x, Mp, Kp, jnp.bfloat16)]
    if x2 is not None:
        xs.append(_pad2(x2, Mp, Kp, jnp.bfloat16))
    wp = _pad2(w, Kp, Np, jnp.bfloat16)
    bp = _pad_bias(b, Np)

    grid = (Mp // tm, Np // tn, Kp // tk)
    x_spec = pl.BlockSpec((tm, tk), lambda i, j, k: (i, k))
    in_specs = [x_spec] * len(xs) + [
        pl.BlockSpec((tk, tn), lambda i, j, k: (k, j)),
        pl.BlockSpec((1, tn), lambda i, j, k: (0, j)),
    ]

    kern = functools.partial(_tiled_linear_kernel,
                             activation=activation, n_x=len(xs))
    out = pl.pallas_call(
        kern,
        out_shape=jax.ShapeDtypeStruct((Mp, Np), out_dtype),
        grid_spec=pltpu.PrefetchScalarGridSpec(
            num_scalar_prefetch=0,
            grid=grid,
            in_specs=in_specs,
            out_specs=pl.BlockSpec((tm, tn), lambda i, j, k: (i, j)),
            scratch_shapes=[pltpu.VMEM((tm, tn), jnp.float32)],
        ),
        compiler_params=pltpu.CompilerParams(
            dimension_semantics=("parallel", "parallel", "arbitrary"),
            vmem_limit_bytes=48 * 1024 * 1024,
        ),
    )(*xs, wp, bp)

    if return_padded:
        return out                      # (Mp, Np) — padded, lane-dense
    return out[:M, :N]


# ----------------------------------------------------------------------------
# Kernel 2: fused adversarial (share) head — one launch instead of three:
#   pooled = tanh(tanh(x @ enc_w + enc_b) @ pool_w + pool_b)
#   issue_logits = pooled @ issue_w + issue_b
# Only token 0 of the share sequence is ever used, so x is [B, H] (no S-wide
# encoding of the share branch). Everything padded lane-dense to 128.
# ----------------------------------------------------------------------------
def _share_head_kernel(x_ref, ew_ref, eb_ref, pw_ref, pb_ref,
                       iw_ref, ib_ref, o_ref):
    h = jnp.tanh(jnp.dot(x_ref[...], ew_ref[...],
                         preferred_element_type=jnp.float32) + eb_ref[...])
    h = jnp.tanh(jnp.dot(h.astype(jnp.bfloat16), pw_ref[...],
                         preferred_element_type=jnp.float32) + pb_ref[...])
    y = jnp.dot(h.astype(jnp.bfloat16), iw_ref[...],
                preferred_element_type=jnp.float32) + ib_ref[...]
    o_ref[...] = y.astype(o_ref.dtype)


def share_issue_head(x, params):
    B, H = x.shape
    issue_num = params["issue_b"].shape[0]
    Bp, Hp, Np = _round_up(B, 8), _round_up(H, 128), _round_up(issue_num, 128)

    xp = _pad2(x, Bp, Hp, jnp.bfloat16)
    ew = _pad2(params["enc_w"], Hp, Hp, jnp.bfloat16)
    eb = _pad_bias(params["enc_b"], Hp)
    pw = _pad2(params["pool_w"], Hp, Hp, jnp.bfloat16)
    pb = _pad_bias(params["pool_b"], Hp)
    iw = _pad2(params["issue_w"], Hp, Np, jnp.bfloat16)
    ib = _pad_bias(params["issue_b"], Np)

    def full(shape):
        return pl.BlockSpec(shape, lambda: (0,) * len(shape))

    out = pl.pallas_call(
        _share_head_kernel,
        out_shape=jax.ShapeDtypeStruct((Bp, Np), jnp.float32),
        in_specs=[full(xp.shape), full(ew.shape), full(eb.shape),
                  full(pw.shape), full(pb.shape), full(iw.shape),
                  full(ib.shape)],
        out_specs=full((Bp, Np)),
    )(xp, ew, eb, pw, pb, iw, ib)
    return out[:B, :issue_num]


# ----------------------------------------------------------------------------
# Kernel 3: extract_at_mask fused with the verbalizer projection.
#   Scalar-prefetch row gather: per batch element b, the index_map picks the
#   single <mask> row of the (padded) sequence output, and the kernel does
#   that row's matmul with the (lane-dense padded) verbalizer weights.
# ----------------------------------------------------------------------------
def _gather_verb_kernel(pos_ref, x_ref, w_ref, b_ref, o_ref):
    del pos_ref  # consumed by the index_map
    y = jnp.dot(x_ref[...], w_ref[...],
                preferred_element_type=jnp.float32) + b_ref[...]
    o_ref[...] = y.astype(o_ref.dtype)


def gather_verbalizer(seq_out_p, pos_flat, w, b, batch):
    Mp, Hp = seq_out_p.shape
    N = w.shape[1]
    Np = _round_up(N, 128)
    wp = _pad2(w, Hp, Np, jnp.bfloat16)
    bp = _pad_bias(b, Np)

    out = pl.pallas_call(
        _gather_verb_kernel,
        out_shape=jax.ShapeDtypeStruct((batch, Np), jnp.float32),
        grid_spec=pltpu.PrefetchScalarGridSpec(
            num_scalar_prefetch=1,
            grid=(batch,),
            in_specs=[
                pl.BlockSpec((1, Hp), lambda i, pos: (pos[i], 0)),
                pl.BlockSpec((Hp, Np), lambda i, pos: (0, 0)),
                pl.BlockSpec((1, Np), lambda i, pos: (0, 0)),
            ],
            out_specs=pl.BlockSpec((1, Np), lambda i, pos: (i, 0)),
        ),
        compiler_params=pltpu.CompilerParams(
            dimension_semantics=("arbitrary",)),
    )(pos_flat, seq_out_p, wp, bp)
    return out[:, :N]


# ----------------------------------------------------------------------------
# Parameter init (deterministic, mirrors _init_fc_weights: xavier_uniform
# weights, zero biases).
# ----------------------------------------------------------------------------
def xavier_uniform(key, shape):
    fan_in, fan_out = shape
    limit = jnp.sqrt(6.0 / (fan_in + fan_out))
    return jax.random.uniform(key, shape, jnp.float32, -limit, limit)


def init_params(key, hidden_size, issue_num, pivot_num, num_label_words):
    ks = jax.random.split(key, 5)
    zeros = lambda n: jnp.zeros((n,), jnp.float32)
    return {
        # surrogate PLM encoder / pooler
        "enc_w": xavier_uniform(ks[0], (hidden_size, hidden_size)),
        "enc_b": zeros(hidden_size),
        "pool_w": xavier_uniform(ks[1], (hidden_size, hidden_size)),
        "pool_b": zeros(hidden_size),
        # self.issue_fc = nn.Linear(hidden_size, issue_num)
        "issue_w": xavier_uniform(ks[2], (hidden_size, issue_num)),
        "issue_b": zeros(issue_num),
        # self.pivot_fc = nn.Linear(hidden_size, pivot_num)
        "pivot_w": xavier_uniform(ks[3], (hidden_size, pivot_num)),
        "pivot_b": zeros(pivot_num),
        # verbalizer projection (label-word logits)
        "verb_w": xavier_uniform(ks[4], (hidden_size, num_label_words)),
        "verb_b": zeros(num_label_words),
    }


# ----------------------------------------------------------------------------
# Forward pass (mirrors JointMLMAdvMlP.forward for train=True)
# ----------------------------------------------------------------------------
def joint_forward(params, issue_embeds, share_embeds, loss_ids, alpha,
                  train=True):
    B, S, H = issue_embeds.shape
    pivot_num = params["pivot_b"].shape[0]
    num_label_words = params["verb_b"].shape[0]

    # ReverseLayerF.apply(share_embeds, alpha) is identity in the forward pass.
    # TODO(synk): gradient reversal (ReverseLayerF) only affects backward.
    rev_share = share_embeds

    # issue_batch['inputs_embeds'] = (issue + share) / 2, fused into the
    # surrogate encoder matmul (no standalone elementwise pass).
    # TODO(synk): the real pretrained LM (transformer) forward is not
    # reproduced; a deterministic single-layer tanh encoder stands in for it.
    xa = issue_embeds.reshape(B * S, H)
    xb = share_embeds.reshape(B * S, H)
    seq_out_p = tiled_linear(xa, params["enc_w"], params["enc_b"],
                             activation="tanh", x2=xb,
                             out_dtype=jnp.bfloat16,
                             return_padded=True)      # (Mp, Hp) bf16

    # Adversarial (share) branch: only token 0 feeds the pooler -> issue_fc,
    # so encode just that row and fuse the whole chain in one small kernel.
    issue_logits = share_issue_head(rev_share[:, 0, :], params)   # (B, issue)

    # mlm_logits = self.pivot_fc(mlm_outputs).view(-1, pivot_num)
    mlm_logits = None
    if train:
        mlm_logits = tiled_linear(seq_out_p, params["pivot_w"],
                                  params["pivot_b"],
                                  out_dtype=jnp.float32)[:B * S, :pivot_num]

    # extract_at_mask: gather the single loss_ids>0 row per example (scalar
    # prefetch), fused with the verbalizer projection.
    # TODO(synk): verbalizer gather_outputs/process_outputs simplified to a
    # linear projection; assumes exactly one <mask> position per example.
    pos = jnp.argmax(loss_ids, axis=-1).astype(jnp.int32)          # (B,)
    pos_flat = jnp.arange(B, dtype=jnp.int32) * S + pos            # flat rows
    label_words_logits = gather_verbalizer(
        seq_out_p, pos_flat, params["verb_w"], params["verb_b"], B
    )[:, :num_label_words]

    if train:
        return label_words_logits, issue_logits, mlm_logits
    return label_words_logits, issue_logits, None


# ----------------------------------------------------------------------------
# Demo
# ----------------------------------------------------------------------------
if __name__ == "__main__":
    B, S, H = 2, 8, 32
    issue_num, pivot_num, num_label_words = 4, 16, 3
    alpha = 0.5

    key = jax.random.PRNGKey(0)
    k_p, k_a, k_b = jax.random.split(key, 3)

    params = init_params(k_p, H, issue_num, pivot_num, num_label_words)

    issue_embeds = jax.random.normal(k_a, (B, S, H), jnp.float32)
    share_embeds = jax.random.normal(k_b, (B, S, H), jnp.float32)

    # one <mask> (loss) position per example
    loss_ids = jnp.zeros((B, S), jnp.int32).at[0, 3].set(1).at[1, 5].set(1)

    label_words_logits, issue_logits, mlm_logits = joint_forward(
        params, issue_embeds, share_embeds, loss_ids, alpha, train=True)

    jax.block_until_ready((label_words_logits, issue_logits, mlm_logits))

    assert label_words_logits.shape == (B, num_label_words)
    assert issue_logits.shape == (B, issue_num)
    assert mlm_logits.shape == (B * S, pivot_num)

    print("KERNEL_OK")
</pallas_src>

<mosaic_0001>
module attributes {stable_mosaic.version = 11 : i64} {
  func.func @_tiled_linear_kernel(%arg0: i32, %arg1: i32, %arg2: i32, %arg3: memref<16x128xbf16, #tpu.memory_space<vmem>>, %arg4: memref<16x128xbf16, #tpu.memory_space<vmem>>, %arg5: memref<128x128xbf16, #tpu.memory_space<vmem>>, %arg6: memref<1x128xf32, #tpu.memory_space<vmem>>, %arg7: memref<16x128xbf16, #tpu.memory_space<vmem>>, %arg8: memref<16x128xf32, #tpu.memory_space<vmem>>) attributes {dimension_semantics = [#tpu.dimension_semantics<parallel>, #tpu.dimension_semantics<parallel>, #tpu.dimension_semantics<arbitrary>], iteration_bounds = array<i64: 1, 1, 1>, scalar_prefetch = 0 : i64, scratch_operands = 1 : i64, tpu.core_type = #tpu.core_type<tc>, window_params = [{transform_indices = @transform_0, window_bounds = array<i64: 16, 128>}, {transform_indices = @transform_1, window_bounds = array<i64: 16, 128>}, {transform_indices = @transform_2, window_bounds = array<i64: 128, 128>}, {transform_indices = @transform_3, window_bounds = array<i64: 1, 128>}, {transform_indices = @transform_4, window_bounds = array<i64: 16, 128>}]} {
    %c0_i32 = arith.constant 0 : i32
    %0 = arith.cmpi eq, %arg2, %c0_i32 : i32
    %1 = arith.extui %0 : i1 to i32
    %c0_i32_0 = arith.constant 0 : i32
    %2 = arith.cmpi ne, %1, %c0_i32_0 : i32
    scf.if %2 {
      %cst_13 = arith.constant 0.000000e+00 : f32
      %19 = vector.broadcast %cst_13 : f32 to vector<16x128xf32>
      %c0_14 = arith.constant 0 : index
      %c0_15 = arith.constant 0 : index
      %20 = vector.load %arg8[%c0_14, %c0_15] : memref<16x128xf32, #tpu.memory_space<vmem>>, vector<16x128xf32>
      tpu.vector_store %arg8[%c0_14, %c0_15], %19 {strides = array<i32>} : memref<16x128xf32, #tpu.memory_space<vmem>>, vector<16x128xf32>,
    } else {
    }
    %c0 = arith.constant 0 : index
    %c0_1 = arith.constant 0 : index
    %3 = vector.load %arg3[%c0, %c0_1] : memref<16x128xbf16, #tpu.memory_space<vmem>>, vector<16x128xbf16>
    %4 = arith.extf %3 : vector<16x128xbf16> to vector<16x128xf32>
    %c0_2 = arith.constant 0 : index
    %c0_3 = arith.constant 0 : index
    %5 = vector.load %arg4[%c0_2, %c0_3] : memref<16x128xbf16, #tpu.memory_space<vmem>>, vector<16x128xbf16>
    %6 = arith.extf %5 : vector<16x128xbf16> to vector<16x128xf32>
    %7 = arith.addf %4, %6 : vector<16x128xf32>
    %cst = arith.constant 5.000000e-01 : f32
    %8 = vector.broadcast %cst : f32 to vector<16x128xf32>
    %9 = arith.mulf %7, %8 : vector<16x128xf32>
    %10 = arith.truncf %9 : vector<16x128xf32> to vector<16x128xbf16>
    %c0_4 = arith.constant 0 : index
    %c0_5 = arith.constant 0 : index
    %11 = vector.load %arg8[%c0_4, %c0_5] : memref<16x128xf32, #tpu.memory_space<vmem>>, vector<16x128xf32>
    %c0_6 = arith.constant 0 : index
    %c0_7 = arith.constant 0 : index
    %12 = vector.load %arg5[%c0_6, %c0_7] : memref<128x128xbf16, #tpu.memory_space<vmem>>, vector<128x128xbf16>
    %cst_8 = arith.constant dense<0.000000e+00> : vector<16x128xf32>
    %13 = tpu.matmul %10, %12, %cst_8 {dimension_numbers = #tpu.dot_dimension_numbers<[1], [0], [0], [1], [0, 0, 1, 1], [], []>} : vector<16x128xbf16>, vector<128x128xbf16>, vector<16x128xf32> -> vector<16x128xf32>
    %14 = arith.addf %11, %13 : vector<16x128xf32>
    %c0_9 = arith.constant 0 : index
    %c0_10 = arith.constant 0 : index
    %15 = vector.load %arg8[%c0_9, %c0_10] : memref<16x128xf32, #tpu.memory_space<vmem>>, vector<16x128xf32>
    tpu.vector_store %arg8[%c0_9, %c0_10], %14 {strides = array<i32>} : memref<16x128xf32, #tpu.memory_space<vmem>>, vector<16x128xf32>,
    %c0_i32_11 = arith.constant 0 : i32
    %16 = arith.cmpi eq, %arg2, %c0_i32_11 : i32
    %17 = arith.extui %16 : i1 to i32
    %c0_i32_12 = arith.constant 0 : i32
    %18 = arith.cmpi ne, %17, %c0_i32_12 : i32
    scf.if %18 {
      %c0_13 = arith.constant 0 : index
      %c0_14 = arith.constant 0 : index
      %19 = vector.load %arg8[%c0_13, %c0_14] : memref<16x128xf32, #tpu.memory_space<vmem>>, vector<16x128xf32>
      %c0_15 = arith.constant 0 : index
      %c0_16 = arith.constant 0 : index
      %20 = vector.load %arg6[%c0_15, %c0_16] : memref<1x128xf32, #tpu.memory_space<vmem>>, vector<1x128xf32>
      %21 = vector.broadcast %20 : vector<1x128xf32> to vector<16x128xf32>
      %22 = arith.addf %19, %21 : vector<16x128xf32>
      %23 = math.tanh %22 : vector<16x128xf32>
      %24 = arith.truncf %23 : vector<16x128xf32> to vector<16x128xbf16>
      %c0_17 = arith.constant 0 : index
      %c0_18 = arith.constant 0 : index
      %25 = vector.load %arg7[%c0_17, %c0_18] : memref<16x128xbf16, #tpu.memory_space<vmem>>, vector<16x128xbf16>
      tpu.vector_store %arg7[%c0_17, %c0_18], %24 {strides = array<i32>} : memref<16x128xbf16, #tpu.memory_space<vmem>>, vector<16x128xbf16>,
    } else {
    }
    return
  }
  func.func @transform_0(%arg0: i32, %arg1: i32, %arg2: i32) -> (i32, i32) {
    %c0_i32 = arith.constant 0 : i32
    return %arg0, %arg2 : i32, i32
  }
  func.func @transform_1(%arg0: i32, %arg1: i32, %arg2: i32) -> (i32, i32) {
    %c0_i32 = arith.constant 0 : i32
    return %arg0, %arg2 : i32, i32
  }
  func.func @transform_2(%arg0: i32, %arg1: i32, %arg2: i32) -> (i32, i32) {
    %c0_i32 = arith.constant 0 : i32
    return %arg2, %arg1 : i32, i32
  }
  func.func @transform_3(%arg0: i32, %arg1: i32, %arg2: i32) -> (i32, i32) {
    %c0_i32 = arith.constant 0 : i32
    %c0_i32_0 = arith.constant 0 : i32
    return %c0_i32, %arg1 : i32, i32
  }
  func.func @transform_4(%arg0: i32, %arg1: i32, %arg2: i32) -> (i32, i32) {
    %c0_i32 = arith.constant 0 : i32
    return %arg0, %arg1 : i32, i32
  }
}

</mosaic_0001>

<llo_original>
// kernel: tpu_custom_call.1
$region0: #{tpu_custom_call.1}
  #allocation0 [shape = 'u32[]', space=smem, size = 0x4, offset = 0x4, fixed_abs, tag = 'smem constant byte address 0x4 - core index']
  #allocation1 [shape = 'u32[144,128]{1,0:T(1,128)}', space=vmem, size = 0x12000, scoped, tag = 'internal scratch']
  #allocation2 [shape = 'f32[16,128]{1,0:T(8,128)}', space=vmem, size = 0x2000, scoped, tag = 'scratch operand']
  %s0 = inlined_call_operand.hbm [shape: bf16[16,128], index: 0, kind: input, shape index: {}]
  %s1 = inlined_call_operand.hbm [shape: bf16[16,128], index: 1, kind: input, shape index: {}]
  %s2 = inlined_call_operand.hbm [shape: bf16[128,128], index: 2, kind: input, shape index: {}]
  %s3 = inlined_call_operand.vmem [shape: f32[1,128], index: 3, kind: input, shape index: {}]
  %s4 = inlined_call_operand.hbm [shape: bf16[16,128], index: 4, kind: output, shape index: {}]
  %s5 = sld [smem:[#allocation0]]
  $region46: #{tpu_custom_call.1} parent=0
    _
  %s7 = ssub.s32 1, %s5
  %s8 = scalar_select 0, %s7, %s5
  $region1: #{tpu_custom_call.1} parent=0
    #allocation3 [shape = 'u8[4096]{0}', space=vmem, size = 0x1000, scoped, tag = 'input window, operand 0, single buffered']
    #allocation4 [shape = 's32[1]{0}', space=sflag, size = 0x4, scoped, tag = 'scoped memory for tpu_custom_call.1']
    #allocation5 [shape = 's32[1]{0}', space=sflag, size = 0x4, scoped, tag = 'scoped memory for tpu_custom_call.1']
    #allocation6 [shape = 'u8[4096]{0}', space=vmem, size = 0x1000, scoped, tag = 'input window, operand 1, single buffered']
    #allocation7 [shape = 's32[1]{0}', space=sflag, size = 0x4, scoped, tag = 'scoped memory for tpu_custom_call.1']
    #allocation8 [shape = 'u8[32768]{0}', space=vmem, size = 0x8000, scoped, tag = 'input window, operand 2, single buffered']
    #allocation9 [shape = 'u8[4096]{0}', space=vmem, size = 0x1000, scoped, tag = 'output window, operand 0, single buffered']
    %9 = vsyncpa [#allocation4], 0
    %10 = vsyncpa [#allocation7], 0
    %11 = vsyncpa [#allocation5], 0
    // Predicated region
    $region2: #{tpu_custom_call.1} parent=1 // pred_check
      _
    $region3: #{tpu_custom_call.1} parent=1 // pred_check_branch
      %13 = sbr.rel (0) target = $region5
    $region4: #{tpu_custom_call.1} parent=1 // pred_region
      %s15 = ssub.s32 128, 128
      %16 = vsyncadd [#allocation4], %s15
      %s17 = sshll.u32 [#allocation3], 4
      %s18 = int_to_ptr.vmem [resolvable:$true] %s17
      %23 = dma.hbm_to_vmem [thread:$0]  %s0, 128, %s18, [#allocation4], 64, 64, 4
    $region5: #{tpu_custom_call.1} parent=1 // pred_fallthru
      _
    // Predicated region
    $region6: #{tpu_custom_call.1} parent=1 // pred_check
      _
    $region7: #{tpu_custom_call.1} parent=1 // pred_check_branch
      %25 = sbr.rel (0) target = $region9
    $region8: #{tpu_custom_call.1} parent=1 // pred_region
      %s27 = ssub.s32 128, 128
      %28 = vsyncadd [#allocation7], %s27
      %s29 = sshll.u32 [#allocation6], 4
      %s30 = int_to_ptr.vmem [resolvable:$true] %s29
      %35 = dma.hbm_to_vmem [thread:$0]  %s1, 128, %s30, [#allocation7], 64, 64, 4
    $region9: #{tpu_custom_call.1} parent=1 // pred_fallthru
      _
    // Predicated region
    $region10: #{tpu_custom_call.1} parent=1 // pred_check
      _
    $region11: #{tpu_custom_call.1} parent=1 // pred_check_branch
      %37 = sbr.rel (0) target = $region13
    $region12: #{tpu_custom_call.1} parent=1 // pred_region
      %s39 = ssub.s32 1024, 1024
      %40 = vsyncadd [#allocation7], %s39
      %s41 = sshll.u32 [#allocation8], 4
      %s42 = int_to_ptr.vmem [resolvable:$true] %s41
      %47 = dma.hbm_to_vmem [thread:$0]  %s2, 1024, %s42, [#allocation7], 64, 64, 4
    $region13: #{tpu_custom_call.1} parent=1 // pred_fallthru
      _
    // Predicated region
    $region14: #{tpu_custom_call.1} parent=1 // pred_check
      _
    $region15: #{tpu_custom_call.1} parent=1 // pred_check_branch
      %49 = sbr.rel (0) target = $region17
    $region16: #{tpu_custom_call.1} parent=1 // pred_region
      _
    $region17: #{tpu_custom_call.1} parent=1 // pred_fallthru
      _
    // Predicated region
    $region18: #{tpu_custom_call.1} parent=1 // pred_check
      _
    $region19: #{tpu_custom_call.1} parent=1 // pred_check_branch
      %51 = sbr.rel (0) target = $region21
    $region20: #{tpu_custom_call.1} parent=1 // pred_region
      %52 = dma.done [#allocation4], 128
    $region21: #{tpu_custom_call.1} parent=1 // pred_fallthru
      _
    // Predicated region
    $region22: #{tpu_custom_call.1} parent=1 // pred_check
      _
    $region23: #{tpu_custom_call.1} parent=1 // pred_check_branch
      %54 = sbr.rel (0) target = $region25
    $region24: #{tpu_custom_call.1} parent=1 // pred_region
      %55 = dma.done [#allocation7], 128
    $region25: #{tpu_custom_call.1} parent=1 // pred_fallthru
      _
    // Predicated region
    $region26: #{tpu_custom_call.1} parent=1 // pred_check
      _
    $region27: #{tpu_custom_call.1} parent=1 // pred_check_branch
      %57 = sbr.rel (0) target = $region29
    $region28: #{tpu_custom_call.1} parent=1 // pred_region
      %58 = dma.done [#allocation7], 1024
    $region29: #{tpu_custom_call.1} parent=1 // pred_fallthru
      _
    %p60 = scmp.eq.s32.totalorder 0, 0
    // Predicated region
    $region30: #{tpu_custom_call.1} parent=1 // pred_check
      %p61 = pneg %p60
    $region31: #{tpu_custom_call.1} parent=1 // pred_check_branch
      %63 = sbr.rel (%p61) target = $region33
    $region32: #{tpu_custom_call.1} parent=1 // pred_region
      %64 = vst [vmem:[#allocation2] sm:$0xff] 0.0
      %65 = vst [vmem:[#allocation2 + $0x8] sm:$0xff] 0.0
    $region33: #{tpu_custom_call.1} parent=1 // pred_fallthru
      _
    %v66 = vld [vmem:[#allocation3] sm:$0xf]
    %v67 = vld [vmem:[#allocation3 + $0x4] sm:$0xf]
    %v68 = vunpack.c.l.bf16 %v66
    %v69 = vunpack.c.l.bf16 %v67
    %v70 = vld [vmem:[#allocation6] sm:$0xf]
    %v71 = vld [vmem:[#allocation6 + $0x4] sm:$0xf]
    %v72 = vunpack.c.l.bf16 %v70
    %v73 = vunpack.c.l.bf16 %v71
    %v74 = vadd.f32 %v68, %v72
    %v75 = vadd.f32 %v69, %v73
    %v76 = vmul.f32 %v74, 0.5
    %v77 = vmul.f32 %v75, 0.5
    %v78 = vpack.c.bf16 %v77, %v76
    %v79 = vld [vmem:[#allocation2] sm:$0xff]
    %v80 = vld [vmem:[#allocation2 + $0x8] sm:$0xff]
    %v81 = vld [vmem:[#allocation8] sm:$0xf]
    %v82 = vld [vmem:[#allocation8 + $0x4] sm:$0xf]
    %v83 = vld [vmem:[#allocation8 + $0x8] sm:$0xf]
    %v84 = vld [vmem:[#allocation8 + $0xc] sm:$0xf]
    %v85 = vld [vmem:[#allocation8 + $0x10] sm:$0xf]
    %v86 = vld [vmem:[#allocation8 + $0x14] sm:$0xf]
    %v87 = vld [vmem:[#allocation8 + $0x18] sm:$0xf]
    %v88 = vld [vmem:[#allocation8 + $0x1c] sm:$0xf]
    %v89 = vld [vmem:[#allocation8 + $0x20] sm:$0xf]
    %v90 = vld [vmem:[#allocation8 + $0x24] sm:$0xf]
    %v91 = vld [vmem:[#allocation8 + $0x28] sm:$0xf]
    %v92 = vld [vmem:[#allocation8 + $0x2c] sm:$0xf]
    %v93 = vld [vmem:[#allocation8 + $0x30] sm:$0xf]
    %v94 = vld [vmem:[#allocation8 + $0x34] sm:$0xf]
    %v95 = vld [vmem:[#allocation8 + $0x38] sm:$0xf]
    %v96 = vld [vmem:[#allocation8 + $0x3c] sm:$0xf]
    %v113 = vunpack.c.l.b16 %v81
    %v114 = vunpack.c.l.b16 %v82
    %v115 = vunpack.c.l.b16 %v83
    %v116 = vunpack.c.l.b16 %v84
    %v117 = vunpack.c.l.b16 %v85
    %v118 = vunpack.c.l.b16 %v86
    %v119 = vunpack.c.l.b16 %v87
    %v120 = vunpack.c.l.b16 %v88
    %v121 = vunpack.c.l.b16 %v89
    %v122 = vunpack.c.l.b16 %v90
    %v123 = vunpack.c.l.b16 %v91
    %v124 = vunpack.c.l.b16 %v92
    %v125 = vunpack.c.l.b16 %v93
    %v126 = vunpack.c.l.b16 %v94
    %v127 = vunpack.c.l.b16 %v95
    %v128 = vunpack.c.l.b16 %v96
    %v129 = vpack.c.b16 %v114, %v113
    %v130 = vpack.c.b16 %v116, %v115
    %v131 = vpack.c.b16 %v118, %v117
    %v132 = vpack.c.b16 %v120, %v119
    %v133 = vpack.c.b16 %v122, %v121
    %v134 = vpack.c.b16 %v124, %v123
    %v135 = vpack.c.b16 %v126, %v125
    %v136 = vpack.c.b16 %v128, %v127
    %145 = vmatprep.subr.bf16.mxu0 0
    %146 = vmatpush1.bf16.msra.mxu0 %v129
    %147 = vmatprep.subr.bf16.mxu0 0
    %148 = vmatpush1.bf16.msra.mxu0 %v130
    %149 = vmatprep.subr.bf16.mxu0 0
    %150 = vmatpush1.bf16.msra.mxu0 %v131
    %151 = vmatprep.subr.bf16.mxu0 0
    %152 = vmatpush1.bf16.msra.mxu0 %v132
    %153 = vmatprep.subr.bf16.mxu0 0
    %154 = vmatpush1.bf16.msra.mxu0 %v133
    %155 = vmatprep.subr.bf16.mxu0 0
    %156 = vmatpush1.bf16.msra.mxu0 %v134
    %157 = vmatprep.subr.bf16.mxu0 0
    %158 = vmatpush1.bf16.msra.mxu0 %v135
    %159 = vmatprep.subr.bf16.mxu0 0
    %160 = vmatpush1.bf16.msra.mxu0 %v136
    %161 = vmatprep.subr.bf16.mxu0 0
    %162 = vmatpush1.bf16.msra.mxu0 0
    %163 = vmatprep.subr.bf16.mxu0 0
    %164 = vmatpush1.bf16.msra.mxu0 0
    %165 = vmatprep.subr.bf16.mxu0 0
    %166 = vmatpush1.bf16.msra.mxu0 0
    %167 = vmatprep.subr.bf16.mxu0 0
    %168 = vmatpush1.bf16.msra.mxu0 0
    %169 = vmatprep.subr.bf16.mxu0 0
    %170 = vmatpush1.bf16.msra.mxu0 0
    %171 = vmatprep.subr.bf16.mxu0 0
    %172 = vmatpush1.bf16.msra.mxu0 0
    %173 = vmatprep.subr.bf16.mxu0 0
    %174 = vmatpush1.bf16.msra.mxu0 0
    %175 = vmatprep.subr.bf16.mxu0 0
    %176 = vmatpush1.bf16.msra.mxu0 0
    %177 = vmatprep.mubr.bf16.mxu0 0
    %178 = vmatmul.mubr.bf16.gmra.mrb[0].mxu0 %v78
    %v179 = vpop.f32.mrb[0].mxu0
    %v180 = vadd.f32 0.0, %v179
    %v181 = vpop.f32.mrb[0].mxu0
    %v182 = vpop.f32.mrb[0].mxu0
    %v183 = vadd.f32 0.0, %v182
    %v184 = vpop.f32.mrb[0].mxu0
    %185 = vdwg.mxu0
    %v186 = vadd.f32 %v79, %v180
    %v187 = vadd.f32 %v80, %v183
    %188 = vst [vmem:[#allocation2] sm:$0xff] %v186
    %189 = vst [vmem:[#allocation2 + $0x8] sm:$0xff] %v187
    // Predicated region
    $region34: #{tpu_custom_call.1} parent=1 // pred_check
      %p190 = pneg %p60
    $region35: #{tpu_custom_call.1} parent=1 // pred_check_branch
      %192 = sbr.rel (%p190) target = $region37
    $region36: #{tpu_custom_call.1} parent=1 // pred_region
      %v193 = vld [vmem:[#allocation2] sm:$0xff]
      %v194 = vld [vmem:[#allocation2 + $0x8] sm:$0xff]
      %v195 = vld [vmem:[%s3] sm:$0x1]
      %v197 = vlaneseq
      %v198 = vshrl.u32 %v197, 7
      %v199 = vsub.s32 0, %v198
      %v200 = vrot.slane %v195, %v199
      %v202 = vadd.f32 %v193, %v200
      %v203 = vadd.f32 %v194, %v200
      %v204 = vtanh.pop %v202
      %v205 = vtanh.pop %v203
      %v206 = vpack.c.bf16 %v205, %v204
      %v208 = vunpack.c.l.b16 %v206
      %v209 = vunpack.c.h.b16 %v206
      %v210 = vpack.c.b16 %v208, %v208
      %v211 = vpack.c.b16 %v209, %v209
      %214 = vst [vmem:[#allocation9] sm:$0xf] %v210
      %215 = vst [vmem:[#allocation9 + $0x4] sm:$0xf] %v211
    $region37: #{tpu_custom_call.1} parent=1 // pred_fallthru
      _
    // Predicated region
    $region38: #{tpu_custom_call.1} parent=1 // pred_check
      _
    $region39: #{tpu_custom_call.1} parent=1 // pred_check_branch
      %217 = sbr.rel (0) target = $region41
    $region40: #{tpu_custom_call.1} parent=1 // pred_region
      %s219 = ssub.s32 128, 128
      %220 = vsyncadd [#allocation5], %s219
      %s221 = sshll.u32 [#allocation9], 4
      %s222 = int_to_ptr.vmem [resolvable:$true] %s221
      %227 = dma.vmem_to_hbm [thread:$0]  %s222, 128, %s4, [#allocation5], 64, 64, 4
    $region41: #{tpu_custom_call.1} parent=1 // pred_fallthru
      _
    // Predicated region
    $region42: #{tpu_custom_call.1} parent=1 // pred_check
      _
    $region43: #{tpu_custom_call.1} parent=1 // pred_check_branch
      %229 = sbr.rel (0) target = $region45
    $region44: #{tpu_custom_call.1} parent=1 // pred_region
      %230 = dma.done [#allocation5], 128
    $region45: #{tpu_custom_call.1} parent=1 // pred_fallthru
      _
    %231 = vsyncpa [#allocation4], 1
    %232 = vsyncpa [#allocation7], 1
    %233 = vsyncpa [#allocation5], 1

</llo_original>
